<compile_context>
chip_gen: v5e
topology: v5e:2x2
jax: 0.10.0
libtpu: 0.0.40
codegen_flags: <defaults>
</compile_context>

<pallas_src>
import functools
import math

import jax
import jax.numpy as jnp
from jax import lax
from jax.experimental import pallas as pl
from jax.experimental.pallas import tpu as pltpu

_LANE = 128
_SUBLANE = 8
_VMEM_TILE_BUDGET = 16 * 2**20     # bytes used for tile sizing (safe on v5e/v6e/v7x)
_VMEM_LIMIT_BYTES = 32 * 2**20     # explicit scoped-VMEM request


def _round_up(x, m):
    return (x + m - 1) // m * m


def _choose_tile_n(n, d, e_pad, tile_n_override=None):
    """Rows of x per grid step, sized against the VMEM budget."""
    if tile_n_override is not None:
        t = max(_SUBLANE, (int(tile_n_override) // _SUBLANE) * _SUBLANE)
    else:
        # double-buffered x tile + double-buffered y tile + whole W + small vecs
        fixed = d * e_pad * 4 + 8 * e_pad * 4
        per_row = (2 * d + 2 * e_pad) * 4
        t = (_VMEM_TILE_BUDGET - fixed) // per_row
        t = max(_SUBLANE, min(1024, int(t)))
        t = (t // _SUBLANE) * _SUBLANE
    return min(t, _round_up(n, _SUBLANE))


def _make_pass1_kernel(tile_n, n_rows, needs_mask):
    """Matmul + streaming sum-of-squares accumulation."""
    inv_sqrt_n = 1.0 / math.sqrt(n_rows)
    sqrt_n = math.sqrt(n_rows)

    def kernel(x_ref, w_ref, b_ref, y_ref, norm_ref, inv_ref, sq_acc):
        i = pl.program_id(0)

        @pl.when(i == 0)
        def _():
            sq_acc[...] = jnp.zeros_like(sq_acc)

        # MXU matmul with f32 accumulation (the "base_model" forward).
        y = jnp.dot(x_ref[...], w_ref[...],
                    preferred_element_type=jnp.float32) + b_ref[...]
        y_ref[...] = y                                   # un-normalized tile out

        if needs_mask:
            # Zero the contribution of zero-padded batch rows (bias makes them
            # non-zero otherwise).
            rows = i * tile_n + lax.broadcasted_iota(jnp.int32, y.shape, 0)
            y = jnp.where(rows < n_rows, y, 0.0)
        sq_acc[...] += jnp.sum(y * y, axis=0, keepdims=True)

        @pl.when(i == pl.num_programs(0) - 1)
        def _():
            sq = sq_acc[...]
            # batch_l2norm = ||y||_col / sqrt(N)   (matches torch reference)
            norm_ref[...] = jnp.sqrt(sq) * jnp.float32(inv_sqrt_n)
            # Reciprocal via EUP rsqrt; tiny clamp keeps padded (all-zero)
            # columns finite -- they are sliced off outside the kernel.
            inv_ref[...] = lax.rsqrt(jnp.maximum(sq, 1e-30)) * jnp.float32(sqrt_n)

    return kernel


def _normalize_kernel(y_ref, inv_ref, out_ref):
    """out = y * (1 / batch_l2norm), in-place on the y buffer."""
    out_ref[...] = y_ref[...] * inv_ref[...]


@functools.partial(jax.jit, static_argnames=("input_dtype", "tile_n"))
def _forward_impl(x, w, b, input_dtype=None, tile_n=None):
    n, d = x.shape
    e = w.shape[1]
    e_pad = _round_up(max(e, _LANE), _LANE)            # lane-dense output columns
    t_n = _choose_tile_n(n, d, e_pad, tile_n)
    n_pad = _round_up(n, t_n)
    num_tiles = n_pad // t_n
    needs_mask = n_pad != n

    w_p = jnp.pad(w, ((0, 0), (0, e_pad - e))) if e_pad != e else w
    b_p = jnp.pad(b, ((0, 0), (0, e_pad - e))) if e_pad != e else b
    x_p = jnp.pad(x, ((0, n_pad - n), (0, 0))) if needs_mask else x

    if input_dtype is not None:                        # optional bf16 DMA/MXU inputs
        x_p = x_p.astype(input_dtype)
        w_p = w_p.astype(input_dtype)
    b_p = b_p.astype(jnp.float32)

    # ---- Pass 1: y = x @ W + b tiles + per-column sum-of-squares reduction ----
    y, norm, inv = pl.pallas_call(
        _make_pass1_kernel(t_n, n, needs_mask),
        out_shape=(
            jax.ShapeDtypeStruct((n_pad, e_pad), jnp.float32),   # un-normalized y
            jax.ShapeDtypeStruct((1, e_pad), jnp.float32),       # batch_l2norm
            jax.ShapeDtypeStruct((1, e_pad), jnp.float32),       # 1 / batch_l2norm
        ),
        grid_spec=pltpu.PrefetchScalarGridSpec(
            num_scalar_prefetch=0,
            grid=(num_tiles,),
            in_specs=[
                pl.BlockSpec((t_n, d), lambda i: (i, 0)),
                pl.BlockSpec((d, e_pad), lambda i: (0, 0)),
                pl.BlockSpec((1, e_pad), lambda i: (0, 0)),
            ],
            out_specs=(
                pl.BlockSpec((t_n, e_pad), lambda i: (i, 0)),
                pl.BlockSpec((1, e_pad), lambda i: (0, 0)),
                pl.BlockSpec((1, e_pad), lambda i: (0, 0)),
            ),
            scratch_shapes=[pltpu.VMEM((1, e_pad), jnp.float32)],
        ),
        compiler_params=pltpu.CompilerParams(
            dimension_semantics=("arbitrary",),        # batch axis is a reduction
            vmem_limit_bytes=_VMEM_LIMIT_BYTES,
        ),
    )(x_p, w_p, b_p)

    # ---- Pass 2: out = y * inv_norm (aliased in place on y) ----
    out = pl.pallas_call(
        _normalize_kernel,
        out_shape=jax.ShapeDtypeStruct((n_pad, e_pad), jnp.float32),
        grid_spec=pltpu.PrefetchScalarGridSpec(
            num_scalar_prefetch=0,
            grid=(num_tiles,),
            in_specs=[
                pl.BlockSpec((t_n, e_pad), lambda i: (i, 0)),
                pl.BlockSpec((1, e_pad), lambda i: (0, 0)),
            ],
            out_specs=pl.BlockSpec((t_n, e_pad), lambda i: (i, 0)),
        ),
        input_output_aliases={0: 0},
        compiler_params=pltpu.CompilerParams(
            dimension_semantics=("parallel",),
            vmem_limit_bytes=_VMEM_LIMIT_BYTES,
        ),
    )(y, inv)

    return out[:n, :e], norm[:, :e]


def batch_l2norm_forward(x, w, b, *, input_dtype=None, tile_n=None):
    """Returns (normalized_output, batch_l2norm)."""
    return _forward_impl(x, w, b, input_dtype=input_dtype, tile_n=tile_n)


class BatchL2NormalizedFunctionsJAX:
    """Plain-Python mirror of the PyTorch module. State updates are glue."""

    def __init__(self, w, b, neigs, momentum=0.9, batchnorm_mode="unbiased"):
        assert batchnorm_mode in ["biased", "unbiased"]
        self.w = w
        self.b = b
        self.momentum = momentum
        self.batchnorm_mode = batchnorm_mode
        self.initialized = False
        self.training = True
        self._norm_biased = jnp.ones((1, neigs), jnp.float32)
        self._norm_unbiased = jnp.ones((1, neigs), jnp.float32)

    def __call__(self, x):
        if self.training:
            out, batch_l2norm = batch_l2norm_forward(x, self.w, self.b)
            self._update_norm(batch_l2norm)
            return out
        # Eval path: normalize by the stored norm (plain-JAX glue).
        norm = (self._norm_biased if self.batchnorm_mode == "biased"
                else self._norm_unbiased)
        return (x @ self.w + self.b) / norm

    def _update_norm(self, batch_l2norm):
        if not self.initialized:
            self.initialized = True
            self._norm_biased = batch_l2norm
            self._norm_unbiased = batch_l2norm
        else:
            m = self.momentum
            self._norm_biased = m * self._norm_biased + (1 - m) * batch_l2norm
            self._norm_unbiased = jnp.sqrt(
                m * self._norm_unbiased ** 2 + (1 - m) * batch_l2norm ** 2
            )
    # TODO(synk): register_norm / register_norm_batch (offline dataset pass) is
    # dataset-iteration glue; its norm reduce would reuse the same pass-1 kernel.


if __name__ == "__main__":
    key = jax.random.PRNGKey(0)
    kx, kw, kb = jax.random.split(key, 3)

    def ref_forward(x, w, b):
        y = x @ w + b
        norm = jnp.linalg.norm(y, axis=0, keepdims=True) / math.sqrt(y.shape[0])
        return y / norm, norm

    # Case 1: N=16, D=32, E=8 (E padded to 128 internally, single tile).
    N, D, E = 16, 32, 8
    x = jax.random.normal(kx, (N, D), dtype=jnp.float32)
    w = jax.random.normal(kw, (D, E), dtype=jnp.float32) * (1.0 / math.sqrt(D))
    b = jax.random.normal(kb, (1, E), dtype=jnp.float32) * 0.01

    model = BatchL2NormalizedFunctionsJAX(w, b, neigs=E, momentum=0.9)
    out = jax.block_until_ready(model(x))
    out_ref, norm_ref = ref_forward(x, w, b)
    assert jnp.allclose(out, out_ref, atol=1e-4, rtol=1e-4), "case1 output mismatch"
    assert jnp.allclose(model._norm_biased, norm_ref, atol=1e-4, rtol=1e-4), "case1 norm mismatch"

    # Case 2: ragged batch (N=20 pads to 24) exercises the padded-row mask.
    x2 = jax.random.normal(kx, (20, D), dtype=jnp.float32)
    out2, norm2 = batch_l2norm_forward(x2, w, b)
    out2 = jax.block_until_ready(out2)
    out2_ref, norm2_ref = ref_forward(x2, w, b)
    assert jnp.allclose(out2, out2_ref, atol=1e-4, rtol=1e-4), "case2 output mismatch"
    assert jnp.allclose(norm2, norm2_ref, atol=1e-4, rtol=1e-4), "case2 norm mismatch"

    # Case 3: multi-tile reduction (N=64 with forced tile_n=16 -> 4 grid steps).
    x3 = jax.random.normal(kw, (64, D), dtype=jnp.float32)
    out3, norm3 = batch_l2norm_forward(x3, w, b, tile_n=16)
    out3 = jax.block_until_ready(out3)
    out3_ref, norm3_ref = ref_forward(x3, w, b)
    assert jnp.allclose(out3, out3_ref, atol=1e-4, rtol=1e-4), "case3 output mismatch"
    assert jnp.allclose(norm3, norm3_ref, atol=1e-4, rtol=1e-4), "case3 norm mismatch"

    print("KERNEL_OK")
</pallas_src>

<mosaic_0001>
module attributes {stable_mosaic.version = 11 : i64} {
  func.func @_normalize_kernel(%arg0: i32, %arg1: memref<16x128xf32, #tpu.memory_space<vmem>>, %arg2: memref<1x128xf32, #tpu.memory_space<vmem>>, %arg3: memref<16x128xf32, #tpu.memory_space<vmem>>) attributes {dimension_semantics = [#tpu.dimension_semantics<parallel>], iteration_bounds = array<i64: 1>, scalar_prefetch = 0 : i64, scratch_operands = 0 : i64, tpu.core_type = #tpu.core_type<tc>, window_params = [{transform_indices = @transform_0, window_bounds = array<i64: 16, 128>}, {pipeline_mode = #tpu.pipeline_mode<synchronous>, transform_indices = @transform_1, window_bounds = array<i64: 1, 128>}, {transform_indices = @transform_2, window_bounds = array<i64: 16, 128>}]} {
    %c0 = arith.constant 0 : index
    %c0_0 = arith.constant 0 : index
    %0 = vector.load %arg1[%c0, %c0_0] : memref<16x128xf32, #tpu.memory_space<vmem>>, vector<16x128xf32>
    %c0_1 = arith.constant 0 : index
    %c0_2 = arith.constant 0 : index
    %1 = vector.load %arg2[%c0_1, %c0_2] : memref<1x128xf32, #tpu.memory_space<vmem>>, vector<1x128xf32>
    %2 = vector.broadcast %1 : vector<1x128xf32> to vector<16x128xf32>
    %3 = arith.mulf %0, %2 : vector<16x128xf32>
    %c0_3 = arith.constant 0 : index
    %c0_4 = arith.constant 0 : index
    %4 = vector.load %arg3[%c0_3, %c0_4] : memref<16x128xf32, #tpu.memory_space<vmem>>, vector<16x128xf32>
    tpu.vector_store %arg3[%c0_3, %c0_4], %3 {strides = array<i32>} : memref<16x128xf32, #tpu.memory_space<vmem>>, vector<16x128xf32>,
    return
  }
  func.func @transform_0(%arg0: i32) -> (i32, i32) {
    %c0_i32 = arith.constant 0 : i32
    %c0_i32_0 = arith.constant 0 : i32
    return %arg0, %c0_i32 : i32, i32
  }
  func.func @transform_1(%arg0: i32) -> (i32, i32) {
    %c0_i32 = arith.constant 0 : i32
    %c0_i32_0 = arith.constant 0 : i32
    %c0_i32_1 = arith.constant 0 : i32
    return %c0_i32, %c0_i32_0 : i32, i32
  }
  func.func @transform_2(%arg0: i32) -> (i32, i32) {
    %c0_i32 = arith.constant 0 : i32
    %c0_i32_0 = arith.constant 0 : i32
    return %arg0, %c0_i32 : i32, i32
  }
}

module attributes {stable_mosaic.version = 11 : i64} {
  func.func @kernel(%arg0: i32, %arg1: memref<16x32xf32, #tpu.memory_space<vmem>>, %arg2: memref<32x128xf32, #tpu.memory_space<vmem>>, %arg3: memref<1x128xf32, #tpu.memory_space<vmem>>, %arg4: memref<16x128xf32, #tpu.memory_space<vmem>>, %arg5: memref<1x128xf32, #tpu.memory_space<vmem>>, %arg6: memref<1x128xf32, #tpu.memory_space<vmem>>, %arg7: memref<1x128xf32, #tpu.memory_space<vmem>>) attributes {dimension_semantics = [#tpu.dimension_semantics<arbitrary>], iteration_bounds = array<i64: 1>, scalar_prefetch = 0 : i64, scratch_operands = 1 : i64, tpu.core_type = #tpu.core_type<tc>, window_params = [{transform_indices = @transform_0, window_bounds = array<i64: 16, 32>}, {pipeline_mode = #tpu.pipeline_mode<synchronous>, transform_indices = @transform_1, window_bounds = array<i64: 32, 128>}, {pipeline_mode = #tpu.pipeline_mode<synchronous>, transform_indices = @transform_2, window_bounds = array<i64: 1, 128>}, {transform_indices = @transform_3, window_bounds = array<i64: 16, 128>}, {pipeline_mode = #tpu.pipeline_mode<synchronous>, transform_indices = @transform_4, window_bounds = array<i64: 1, 128>}, {pipeline_mode = #tpu.pipeline_mode<synchronous>, transform_indices = @transform_5, window_bounds = array<i64: 1, 128>}]} {
    %c0_i32 = arith.constant 0 : i32
    %0 = arith.cmpi eq, %arg0, %c0_i32 : i32
    %1 = arith.extui %0 : i1 to i32
    %c0_i32_0 = arith.constant 0 : i32
    %2 = arith.cmpi ne, %1, %c0_i32_0 : i32
    scf.if %2 {
      %cst_15 = arith.constant 0.000000e+00 : f32
      %19 = vector.broadcast %cst_15 : f32 to vector<1x128xf32>
      %c0_16 = arith.constant 0 : index
      %c0_17 = arith.constant 0 : index
      %20 = vector.load %arg7[%c0_16, %c0_17] : memref<1x128xf32, #tpu.memory_space<vmem>>, vector<1x128xf32>
      tpu.vector_store %arg7[%c0_16, %c0_17], %19 {strides = array<i32>} : memref<1x128xf32, #tpu.memory_space<vmem>>, vector<1x128xf32>,
    } else {
    }
    %c0 = arith.constant 0 : index
    %c0_1 = arith.constant 0 : index
    %3 = vector.load %arg1[%c0, %c0_1] : memref<16x32xf32, #tpu.memory_space<vmem>>, vector<16x32xf32>
    %c0_2 = arith.constant 0 : index
    %c0_3 = arith.constant 0 : index
    %4 = vector.load %arg2[%c0_2, %c0_3] : memref<32x128xf32, #tpu.memory_space<vmem>>, vector<32x128xf32>
    %cst = arith.constant dense<0.000000e+00> : vector<16x128xf32>
    %5 = tpu.matmul %3, %4, %cst {dimension_numbers = #tpu.dot_dimension_numbers<[1], [0], [0], [1], [0, 0, 1, 1], [], []>} : vector<16x32xf32>, vector<32x128xf32>, vector<16x128xf32> -> vector<16x128xf32>
    %c0_4 = arith.constant 0 : index
    %c0_5 = arith.constant 0 : index
    %6 = vector.load %arg3[%c0_4, %c0_5] : memref<1x128xf32, #tpu.memory_space<vmem>>, vector<1x128xf32>
    %7 = vector.broadcast %6 : vector<1x128xf32> to vector<16x128xf32>
    %8 = arith.addf %5, %7 : vector<16x128xf32>
    %c0_6 = arith.constant 0 : index
    %c0_7 = arith.constant 0 : index
    %9 = vector.load %arg4[%c0_6, %c0_7] : memref<16x128xf32, #tpu.memory_space<vmem>>, vector<16x128xf32>
    tpu.vector_store %arg4[%c0_6, %c0_7], %8 {strides = array<i32>} : memref<16x128xf32, #tpu.memory_space<vmem>>, vector<16x128xf32>,
    %c0_8 = arith.constant 0 : index
    %c0_9 = arith.constant 0 : index
    %10 = vector.load %arg7[%c0_8, %c0_9] : memref<1x128xf32, #tpu.memory_space<vmem>>, vector<1x128xf32>
    %11 = arith.mulf %8, %8 : vector<16x128xf32>
    %cst_10 = arith.constant dense<0.000000e+00> : vector<128xf32>
    %12 = vector.multi_reduction <add>, %11, %cst_10 [0] : vector<16x128xf32> to vector<128xf32>
    %13 = vector.shape_cast %12 : vector<128xf32> to vector<1x128xf32>
    %14 = arith.addf %10, %13 : vector<1x128xf32>
    %c0_11 = arith.constant 0 : index
    %c0_12 = arith.constant 0 : index
    %15 = vector.load %arg7[%c0_11, %c0_12] : memref<1x128xf32, #tpu.memory_space<vmem>>, vector<1x128xf32>
    tpu.vector_store %arg7[%c0_11, %c0_12], %14 {strides = array<i32>} : memref<1x128xf32, #tpu.memory_space<vmem>>, vector<1x128xf32>,
    %c0_i32_13 = arith.constant 0 : i32
    %16 = arith.cmpi eq, %arg0, %c0_i32_13 : i32
    %17 = arith.extui %16 : i1 to i32
    %c0_i32_14 = arith.constant 0 : i32
    %18 = arith.cmpi ne, %17, %c0_i32_14 : i32
    scf.if %18 {
      %c0_15 = arith.constant 0 : index
      %c0_16 = arith.constant 0 : index
      %19 = vector.load %arg7[%c0_15, %c0_16] : memref<1x128xf32, #tpu.memory_space<vmem>>, vector<1x128xf32>
      %20 = math.sqrt %19 : vector<1x128xf32>
      %cst_17 = arith.constant 2.500000e-01 : f32
      %21 = vector.broadcast %cst_17 : f32 to vector<1x128xf32>
      %22 = arith.mulf %20, %21 : vector<1x128xf32>
      %c0_18 = arith.constant 0 : index
      %c0_19 = arith.constant 0 : index
      %23 = vector.load %arg5[%c0_18, %c0_19] : memref<1x128xf32, #tpu.memory_space<vmem>>, vector<1x128xf32>
      tpu.vector_store %arg5[%c0_18, %c0_19], %22 {strides = array<i32>} : memref<1x128xf32, #tpu.memory_space<vmem>>, vector<1x128xf32>,
      %cst_20 = arith.constant 1.000000e-30 : f32
      %24 = vector.broadcast %cst_20 : f32 to vector<1x128xf32>
      %25 = arith.maximumf %19, %24 : vector<1x128xf32>
      %26 = math.rsqrt %25 : vector<1x128xf32>
      %cst_21 = arith.constant 4.000000e+00 : f32
      %27 = vector.broadcast %cst_21 : f32 to vector<1x128xf32>
      %28 = arith.mulf %26, %27 : vector<1x128xf32>
      %c0_22 = arith.constant 0 : index
      %c0_23 = arith.constant 0 : index
      %29 = vector.load %arg6[%c0_22, %c0_23] : memref<1x128xf32, #tpu.memory_space<vmem>>, vector<1x128xf32>
      tpu.vector_store %arg6[%c0_22, %c0_23], %28 {strides = array<i32>} : memref<1x128xf32, #tpu.memory_space<vmem>>, vector<1x128xf32>,
    } else {
    }
    return
  }
  func.func @transform_0(%arg0: i32) -> (i32, i32) {
    %c0_i32 = arith.constant 0 : i32
    %c0_i32_0 = arith.constant 0 : i32
    return %arg0, %c0_i32 : i32, i32
  }
  func.func @transform_1(%arg0: i32) -> (i32, i32) {
    %c0_i32 = arith.constant 0 : i32
    %c0_i32_0 = arith.constant 0 : i32
    %c0_i32_1 = arith.constant 0 : i32
    return %c0_i32, %c0_i32_0 : i32, i32
  }
  func.func @transform_2(%arg0: i32) -> (i32, i32) {
    %c0_i32 = arith.constant 0 : i32
    %c0_i32_0 = arith.constant 0 : i32
    %c0_i32_1 = arith.constant 0 : i32
    return %c0_i32, %c0_i32_0 : i32, i32
  }
  func.func @transform_3(%arg0: i32) -> (i32, i32) {
    %c0_i32 = arith.constant 0 : i32
    %c0_i32_0 = arith.constant 0 : i32
    return %arg0, %c0_i32 : i32, i32
  }
  func.func @transform_4(%arg0: i32) -> (i32, i32) {
    %c0_i32 = arith.constant 0 : i32
    %c0_i32_0 = arith.constant 0 : i32
    %c0_i32_1 = arith.constant 0 : i32
    return %c0_i32, %c0_i32_0 : i32, i32
  }
  func.func @transform_5(%arg0: i32) -> (i32, i32) {
    %c0_i32 = arith.constant 0 : i32
    %c0_i32_0 = arith.constant 0 : i32
    %c0_i32_1 = arith.constant 0 : i32
    return %c0_i32, %c0_i32_0 : i32, i32
  }
}

</mosaic_0001>

<llo_original>
// kernel: _forward_impl.2
$region0: #{_forward_impl.2}
  #allocation0 [shape = 'u32[]', space=smem, size = 0x4, offset = 0x4, fixed_abs, tag = 'smem constant byte address 0x4 - core index']
  #allocation1 [shape = 'u32[72,128]{1,0:T(1,128)}', space=vmem, size = 0x9000, scoped, tag = 'internal scratch']
  #allocation2 [shape = 'f32[1,128]{1,0:T(1,128)}', space=vmem, size = 0x200, scoped, tag = 'scratch operand']
  %s0 = inlined_call_operand.vmem [shape: f32[16,32], index: 0, kind: input, shape index: {}]
  %s1 = inlined_call_operand.vmem [shape: f32[32,128], index: 1, kind: input, shape index: {}]
  %s2 = inlined_call_operand.vmem [shape: f32[1,128], index: 2, kind: input, shape index: {}]
  %s3 = inlined_call_operand.vmem [shape: f32[16,128], index: 3, kind: output, shape index: {0}]
  %s4 = inlined_call_operand.hbm [shape: f32[1,128], index: 4, kind: output, shape index: {1}]
  %s5 = inlined_call_operand.vmem [shape: f32[1,128], index: 5, kind: output, shape index: {2}]
  %6 = xla_tuple %s3, %s4, %s5
  %s7 = sld [smem:[#allocation0]]
  $region46: #{_forward_impl.2} parent=0
    _
  %s9 = ssub.s32 1, %s7
  %s10 = scalar_select 0, %s9, %s7
  $region1: #{_forward_impl.2} parent=0
    #allocation3 [shape = 'u8[512]{0}', space=vmem, size = 0x400, scoped, tag = 'output window, operand 1, single buffered']
    #allocation4 [shape = 's32[1]{0}', space=sflag, size = 0x4, scoped, tag = 'scoped memory for _forward_impl.2']
    %11 = vsyncpa [#allocation4], 0
    // Predicated region
    $region2: #{_forward_impl.2} parent=1 // pred_check
      _
    $region3: #{_forward_impl.2} parent=1 // pred_check_branch
      %13 = sbr.rel (0) target = $region5
    $region4: #{_forward_impl.2} parent=1 // pred_region
      _
    $region5: #{_forward_impl.2} parent=1 // pred_fallthru
      _
    // Predicated region
    $region6: #{_forward_impl.2} parent=1 // pred_check
      _
    $region7: #{_forward_impl.2} parent=1 // pred_check_branch
      %15 = sbr.rel (0) target = $region9
    $region8: #{_forward_impl.2} parent=1 // pred_region
      _
    $region9: #{_forward_impl.2} parent=1 // pred_fallthru
      _
    // Predicated region
    $region10: #{_forward_impl.2} parent=1 // pred_check
      _
    $region11: #{_forward_impl.2} parent=1 // pred_check_branch
      %17 = sbr.rel (0) target = $region13
    $region12: #{_forward_impl.2} parent=1 // pred_region
      _
    $region13: #{_forward_impl.2} parent=1 // pred_fallthru
      _
    %p18 = scmp.eq.s32.totalorder 0, 0
    // Predicated region
    $region14: #{_forward_impl.2} parent=1 // pred_check
      %p19 = pneg %p18
    $region15: #{_forward_impl.2} parent=1 // pred_check_branch
      %21 = sbr.rel (%p19) target = $region17
    $region16: #{_forward_impl.2} parent=1 // pred_region
      %22 = vst [vmem:[#allocation2] sm:$0x1] 0.0
    $region17: #{_forward_impl.2} parent=1 // pred_fallthru
      _
    %v23 = vld [vmem:[%s0] sm:$0xff]
    %v24 = vld [vmem:[%s0 + $0x8] sm:$0xff]
    %v25 = vld [vmem:[%s1] sm:$0xff]
    %v26 = vld [vmem:[%s1 + $0x8] sm:$0xff]
    %v27 = vld [vmem:[%s1 + $0x10] sm:$0xff]
    %v28 = vld [vmem:[%s1 + $0x18] sm:$0xff]
    %v29 = vld [vmem:[%s2] sm:$0x1]
    %v31 = vperm.slane %v29, 0
    %vm33 = vcmask 261120
    %v35 = vsel %vm33, %v23, 0
    %v38 = vsel %vm33, %v24, 0
    %40 = vmatpush.msra.mxu0 0.0
    %41 = vmatpush.msra.mxu0 0.0
    %42 = vmatpush.msra.mxu0 0.0
    %43 = vmatpush.msra.mxu0 0.0
    %44 = vmatpush.msra.mxu0 0.0
    %45 = vmatpush.msra.mxu0 0.0
    %46 = vmatpush.msra.mxu0 0.0
    %47 = vmatpush.msra.mxu0 0.0
    %48 = vmatpush.msra.mxu0 0.0
    %49 = vmatpush.msra.mxu0 0.0
    %50 = vmatpush.msra.mxu0 0.0
    %51 = vmatpush.msra.mxu0 0.0
    %52 = vmatpush.msra.mxu0 %v28
    %53 = vmatpush.msra.mxu0 %v27
    %54 = vmatpush.msra.mxu0 %v26
    %55 = vmatpush.msra.mxu0 %v25
    %56 = vmatmul.f32.gmra.mxu0 %v35
    %v57 = vpop.f32.mrf.mxu0
    %v58 = vadd.f32 %v31, %v57
    %59 = vmatmul.f32.gmra.mxu0 %v38
    %v60 = vpop.f32.mrf.mxu0
    %v61 = vadd.f32 %v31, %v60
    %62 = vdwg.mxu0
    %63 = vst [vmem:[%s3] sm:$0xff] %v58
    %64 = vst [vmem:[%s3 + $0x8] sm:$0xff] %v61
    %v65 = vld [vmem:[#allocation2] sm:$0x1]
    %v66 = vmul.f32 %v58, %v58
    %v67 = vmul.f32 %v61, %v61
    %v68 = vadd.f32 %v66, %v67
    %v69 = vrot.slane %v68, 4
    %v70 = vadd.f32 %v68, %v69
    %v71 = vrot.slane %v70, 2
    %v72 = vadd.f32 %v70, %v71
    %v73 = vrot.slane %v72, 1
    %v74 = vadd.f32 %v72, %v73
    %v75 = vadd.f32 %v65, %v74
    %76 = vst [vmem:[#allocation2] sm:$0x1] %v75
    // Predicated region
    $region18: #{_forward_impl.2} parent=1 // pred_check
      %p77 = pneg %p18
    $region19: #{_forward_impl.2} parent=1 // pred_check_branch
      %79 = sbr.rel (%p77) target = $region21
    $region20: #{_forward_impl.2} parent=1 // pred_region
      %v80 = vld [vmem:[#allocation2] sm:$0x1]
      %v81 = vrsqrt.pop %v80
      %v82 = vmul.f32 %v81, %v80
      %v83 = vmul.f32 %v82, %v81
      %v84 = vmul.f32 0.5, %v83
      %v85 = vsub.f32 1.5, %v84
      %v86 = vmul.f32 %v81, %v85
      %v87 = vmul.f32 %v80, %v86
      %vm88 = vcmp.eq.f32.partialorder %v80, inf
      %v89 = vsel %vm88, %v80, %v87
      %vm90 = vcmp.eq.f32.partialorder %v80, 0.0
      %v91 = vand.u32 %v80, 2147483648
      %v92 = vsel %vm90, %v91, %v89
      %v93 = vmul.f32 %v92, 0.25
      %94 = vst [vmem:[#allocation3] sm:$0x1] %v93
      %v95 = vmax.f32 %v80, 1e-30
      %v96 = vrsqrt.pop %v95
      %v97 = vmul.f32 %v96, %v95
      %v98 = vmul.f32 %v97, %v96
      %v99 = vmul.f32 0.5, %v98
      %v100 = vsub.f32 1.5, %v99
      %v101 = vmul.f32 %v96, %v100
      %vm102 = vweird.f32 %v95
      %vm103 = vweird.f32 %v96
      %vm104 = vmor %vm102, %vm103
      %v105 = vsel %vm104, %v96, %v101
      %v106 = vmul.f32 %v105, 4.0
      %107 = vst [vmem:[%s5] sm:$0x1] %v106
    $region21: #{_forward_impl.2} parent=1 // pred_fallthru
      _
    // Predicated region
    $region22: #{_forward_impl.2} parent=1 // pred_check
      _
    $region23: #{_forward_impl.2} parent=1 // pred_check_branch
      %109 = sbr.rel (0) target = $region25
    $region24: #{_forward_impl.2} parent=1 // pred_region
      _
    $region25: #{_forward_impl.2} parent=1 // pred_fallthru
      _
    // Predicated region
    $region26: #{_forward_impl.2} parent=1 // pred_check
      _
    $region27: #{_forward_impl.2} parent=1 // pred_check_branch
      %111 = sbr.rel (0) target = $region29
    $region28: #{_forward_impl.2} parent=1 // pred_region
      %113 = vsyncadd [#allocation4], 0
      %s115 = sshll.u32 [#allocation3], 4
      %s116 = int_to_ptr.vmem [resolvable:$true] %s115
      %s117 = sshll.u32 %s4, 4
      %s118 = int_to_ptr.hbm [resolvable:$true] %s117
      %120 = dma.vmem_to_hbm [thread:$0]  %s116, 16, %s118, [#allocation4]
    $region29: #{_forward_impl.2} parent=1 // pred_fallthru
      _
    // Predicated region
    $region30: #{_forward_impl.2} parent=1 // pred_check
      _
    $region31: #{_forward_impl.2} parent=1 // pred_check_branch
      %122 = sbr.rel (0) target = $region33
    $region32: #{_forward_impl.2} parent=1 // pred_region
      _
    $region33: #{_forward_impl.2} parent=1 // pred_fallthru
      _
    // Predicated region
    $region34: #{_forward_impl.2} parent=1 // pred_check
      _
    $region35: #{_forward_impl.2} parent=1 // pred_check_branch
      %124 = sbr.rel (0) target = $region37
    $region36: #{_forward_impl.2} parent=1 // pred_region
      _
    $region37: #{_forward_impl.2} parent=1 // pred_fallthru
      _
    // Predicated region
    $region38: #{_forward_impl.2} parent=1 // pred_check
      _
    $region39: #{_forward_impl.2} parent=1 // pred_check_branch
      %126 = sbr.rel (0) target = $region41
    $region40: #{_forward_impl.2} parent=1 // pred_region
      %128 = dma.done [#allocation4], 16
    $region41: #{_forward_impl.2} parent=1 // pred_fallthru
      _
    // Predicated region
    $region42: #{_forward_impl.2} parent=1 // pred_check
      _
    $region43: #{_forward_impl.2} parent=1 // pred_check_branch
      %130 = sbr.rel (0) target = $region45
    $region44: #{_forward_impl.2} parent=1 // pred_region
      _
    $region45: #{_forward_impl.2} parent=1 // pred_fallthru
      _
    %131 = vsyncpa [#allocation4], 1

// kernel: _forward_impl.3
$region0: #{_forward_impl.3}
  #allocation0 [shape = 'u32[]', space=smem, size = 0x4, offset = 0x4, fixed_abs, tag = 'smem constant byte address 0x4 - core index']
  #allocation1 [shape = 'u32[72,128]{1,0:T(1,128)}', space=vmem, size = 0x9000, scoped, tag = 'internal scratch']
  %s0 = inlined_call_operand.vmem [shape: f32[16,128], index: 0, kind: input, shape index: {}, may-alias: {0,2}]
  %s1 = inlined_call_operand.vmem [shape: f32[1,128], index: 1, kind: input, shape index: {}]
  %s2 = inlined_call_operand.vmem [shape: f32[16,128], index: 2, kind: output, shape index: {}, may-alias: {0,2}]
  %s3 = sld [smem:[#allocation0]]
  $region18: #{_forward_impl.3} parent=0
    _
  %s5 = ssub.s32 1, %s3
  %s6 = scalar_select 0, %s5, %s3
  // Predicated region
  $region2: #{_forward_impl.3} parent=0 // pred_check
    _
  $region3: #{_forward_impl.3} parent=0 // pred_check_branch
    %8 = sbr.rel (0) target = $region5
  $region4: #{_forward_impl.3} parent=0 // pred_region
    _
  $region5: #{_forward_impl.3} parent=0 // pred_fallthru
    _
  // Predicated region
  $region6: #{_forward_impl.3} parent=0 // pred_check
    _
  $region7: #{_forward_impl.3} parent=0 // pred_check_branch
    %10 = sbr.rel (0) target = $region9
  $region8: #{_forward_impl.3} parent=0 // pred_region
    _
  $region9: #{_forward_impl.3} parent=0 // pred_fallthru
    _
  %v11 = vld [vmem:[%s0] sm:$0xff]
  %v12 = vld [vmem:[%s0 + $0x8] sm:$0xff]
  %v13 = vld [vmem:[%s1] sm:$0x1]
  %v15 = vperm.slane %v13, 0
  %v17 = vmul.f32 %v11, %v15
  %v18 = vmul.f32 %v12, %v15
  %19 = vst [vmem:[%s2] sm:$0xff] %v17
  %20 = vst [vmem:[%s2 + $0x8] sm:$0xff] %v18
  // Predicated region
  $region10: #{_forward_impl.3} parent=0 // pred_check
    _
  $region11: #{_forward_impl.3} parent=0 // pred_check_branch
    %22 = sbr.rel (0) target = $region13
  $region12: #{_forward_impl.3} parent=0 // pred_region
    _
  $region13: #{_forward_impl.3} parent=0 // pred_fallthru
    _
  // Predicated region
  $region14: #{_forward_impl.3} parent=0 // pred_check
    _
  $region15: #{_forward_impl.3} parent=0 // pred_check_branch
    %24 = sbr.rel (0) target = $region17
  $region16: #{_forward_impl.3} parent=0 // pred_region
    _
  $region17: #{_forward_impl.3} parent=0 // pred_fallthru
    _

</llo_original>
